<compile_context>
chip_gen: v6e
topology: v6e:2x2x1
jax: 0.10.0
libtpu: 0.0.40
codegen_flags: <defaults>
</compile_context>

<pallas_src>
import jax
import jax.numpy as jnp
from jax.experimental import pallas as pl
from jax.experimental.pallas import tpu as pltpu


def _round_up(x, m):
    return (x + m - 1) // m * m


def _vmem_capacity_bytes():
    """Physical VMEM per TensorCore; conservative (v7x-sized) fallback."""
    try:
        return int(pltpu.get_tpu_info().vmem_capacity_bytes)
    except Exception:
        return 64 * 1024 * 1024


def _pick_tile(batch, n_tok_pad):
    """Rows per grid step = reps * n_tok_pad, reps | batch (whole images per tile).

    v7x (<=64 MiB VMEM/TC): target ~512-row tiles, >=4 grid steps (>=2 per TC).
    v5e/v6e (128 MiB):      target ~1024-row tiles, >=2 grid steps.
    """
    vmem_cap = _vmem_capacity_bytes()
    if vmem_cap <= 64 * 1024 * 1024:
        target_rows, min_steps = 512, 4
    else:
        target_rows, min_steps = 1024, 2
    min_steps = min(min_steps, batch)
    reps = 1
    for r in range(1, batch + 1):
        if batch % r:
            continue
        if r * n_tok_pad <= target_rows and batch // r >= min_steps:
            reps = r
    return reps * n_tok_pad


def _patch_embed_kernel(x_ref, w_ref, add_ref, o_ref):
    # x_ref:   (tile_rows, d_in)    bf16  flat (image, padded-token) rows
    #                                     (cls rows and token-pad rows are zero)
    # w_ref:   (d_in, hidden)       bf16  conv weight, resident (constant index_map)
    # add_ref: (n_tok_pad, hidden)  f32   per-token additive (cls/bias/pos fused)
    # o_ref:   (tile_rows, hidden)  bf16 (or requested out dtype)
    y = jnp.dot(x_ref[...], w_ref[...], preferred_element_type=jnp.float32)
    reps = x_ref.shape[0] // add_ref.shape[0]
    add = add_ref[...]
    if reps > 1:
        # Broadcast the per-token table across the `reps` images of this tile.
        # n_tok_pad is a multiple of 16 -> sublane-aligned concat, stays on-chip.
        add = jnp.concatenate([add] * reps, axis=0)
    o_ref[...] = (y + add).astype(o_ref.dtype)


def patch_embed_pallas(x_rows, w_t, add, tile_rows, out_dtype):
    m_total, d_in = x_rows.shape
    hidden = w_t.shape[1]
    n_tok_pad = add.shape[0]
    grid = (m_total // tile_rows,)

    # VMEM budget from the actual buffers (worst case: everything double-buffered),
    # with ~2x + 16 MiB headroom, clamped to 75% of physical VMEM.  [feedback 4,5]
    out_bytes = jnp.dtype(out_dtype).itemsize
    need = 2 * (tile_rows * d_in * 2            # x tile (bf16)
                + tile_rows * hidden * out_bytes  # out tile
                + d_in * hidden * 2             # weight (bf16)
                + n_tok_pad * hidden * 4)       # additive table (f32)
    vmem_cap = _vmem_capacity_bytes()
    vmem_limit = int(min(int(0.75 * vmem_cap),
                         max(32 * 1024 * 1024, 2 * need + (16 << 20))))

    return pl.pallas_call(
        _patch_embed_kernel,
        out_shape=jax.ShapeDtypeStruct((m_total, hidden), out_dtype),
        grid_spec=pltpu.PrefetchScalarGridSpec(
            num_scalar_prefetch=0,
            grid=grid,
            in_specs=[
                pl.BlockSpec((tile_rows, d_in), lambda m: (m, 0)),
                # constant index maps -> fetched once, stay resident in VMEM
                pl.BlockSpec((d_in, hidden), lambda m: (0, 0)),
                pl.BlockSpec((n_tok_pad, hidden), lambda m: (0, 0)),
            ],
            out_specs=pl.BlockSpec((tile_rows, hidden), lambda m: (m, 0)),
        ),
        compiler_params=pltpu.CompilerParams(
            dimension_semantics=("parallel",),
            vmem_limit_bytes=vmem_limit,
        ),
    )(x_rows, w_t, add)


def embeddings_forward(x, conv_w, conv_b, pos_emb, cls_tok,
                       *, out_dtype=jnp.bfloat16, tile_rows=None):
    """ViT Embeddings forward (eval mode): patch projection + cls concat + pos add,
    all produced by a single Pallas kernel output stream."""
    B, C, H, W = x.shape
    hidden, _, P, _ = conv_w.shape
    nH, nW = H // P, W // P
    n_patches = nH * nW
    n_tokens = n_patches + 1
    n_tok_pad = _round_up(n_tokens, 16)          # 16-aligned token axis (197 -> 208)
    d_in = C * P * P                             # K kept at d_in: no HBM zero-pad

    # ---- glue: im2col with the (c, ph, pw) flatten order matching the conv weight.
    patches = x.reshape(B, C, nH, P, nW, P)
    patches = patches.transpose(0, 2, 4, 1, 3, 5).reshape(B, n_patches, d_in)

    # One zero "cls" row in front + zero pad rows at the tail of each image's token
    # axis; bf16 operands (MXU-native), f32 accumulation in the kernel.  x_rows is
    # materialized once (contiguous write) and read back sequentially by the kernel.
    x_rows = jnp.pad(patches.astype(jnp.bfloat16),
                     ((0, 0), (1, n_tok_pad - n_tokens), (0, 0)))
    x_rows = x_rows.reshape(B * n_tok_pad, d_in)

    w_t = conv_w.reshape(hidden, d_in).T.astype(jnp.bfloat16)   # (d_in, hidden)

    # Per-token additive (f32, added once in the kernel epilogue):
    #   token 0            : cls_token + pos_emb[0]   (zero input row, no conv bias)
    #   tokens 1..n_patches: conv bias + pos_emb[1:]
    #   pad tokens         : 0 (rows sliced away below)
    add = jnp.concatenate(
        [(cls_tok[0, 0] + pos_emb[0, 0])[None, :],
         conv_b[None, :] + pos_emb[0, 1:, :],
         jnp.zeros((n_tok_pad - n_tokens, hidden), jnp.float32)], axis=0)

    if tile_rows is None:
        tile_rows = _pick_tile(B, n_tok_pad)

    out_flat = patch_embed_pallas(x_rows, w_t, add, tile_rows, out_dtype)
    out = out_flat.reshape(B, n_tok_pad, hidden)[:, :n_tokens, :]
    # NOTE: a downstream encoder could consume the 16-aligned padded token axis
    # directly (with masking) and skip this slice copy entirely.

    # TODO(synk): nn.Dropout treated as identity (eval mode); training-mode dropout
    # would use pltpu.prng_seed / pltpu.prng_random_bits inside the kernel.
    # TODO(synk): the Encoder blocks (LayerNorm / attention / MLP) and the
    # classification head are separate GEMM/attention kernels, not covered by
    # this patch-embedding kernel.
    return out


if __name__ == "__main__":
    # Small config consistent with the module.  hidden_size must be 768 because
    # the forward hard-codes `.expand(bs, 1, 768)` for the class token.
    B, C, IMG, P, HID = 2, 3, 16, 8, 768
    n_patches = (IMG // P) * (IMG // P)                        # 4

    key = jax.random.PRNGKey(0)
    kx, kw, kb, kp, kc = jax.random.split(key, 5)
    x = jax.random.normal(kx, (B, C, IMG, IMG), dtype=jnp.float32)
    conv_w = 0.02 * jax.random.normal(kw, (HID, C, P, P), dtype=jnp.float32)
    conv_b = 0.02 * jax.random.normal(kb, (HID,), dtype=jnp.float32)
    pos_emb = 0.01 * jax.random.normal(kp, (1, n_patches + 1, HID), dtype=jnp.float32)
    cls_tok = 0.01 * jax.random.normal(kc, (1, 1, HID), dtype=jnp.float32)

    # Pure-JAX f32 reference (im2col + einsum + concat + pos add).  The kernel uses
    # bf16 operands / f32 accumulation / bf16 output, so tolerance is loosened.
    patches_ref = x.reshape(B, C, IMG // P, P, IMG // P, P)
    patches_ref = patches_ref.transpose(0, 2, 4, 1, 3, 5).reshape(B, n_patches, C * P * P)
    proj_ref = jnp.einsum("bpd,hd->bph", patches_ref, conv_w.reshape(HID, -1)) + conv_b
    ref = jnp.concatenate([jnp.broadcast_to(cls_tok, (B, 1, HID)), proj_ref], axis=1) + pos_emb

    # 1) default path (auto tile selection; one image per tile here -> reps == 1)
    fwd = jax.jit(embeddings_forward)
    out = jax.block_until_ready(fwd(x, conv_w, conv_b, pos_emb, cls_tok))
    assert out.shape == (B, n_patches + 1, HID), out.shape
    err = float(jnp.max(jnp.abs(out.astype(jnp.float32) - ref)))
    assert err < 3e-2, err

    # 2) multi-image tile path (reps > 1), exercising the in-kernel broadcast of
    #    the (n_tok_pad, hidden) additive table across images.
    n_tok_pad = _round_up(n_patches + 1, 16)
    fwd2 = jax.jit(lambda *a: embeddings_forward(*a, tile_rows=2 * n_tok_pad))
    out2 = jax.block_until_ready(fwd2(x, conv_w, conv_b, pos_emb, cls_tok))
    err2 = float(jnp.max(jnp.abs(out2.astype(jnp.float32) - ref)))
    assert err2 < 3e-2, err2

    print("KERNEL_OK")
</pallas_src>

<mosaic_0001>
module attributes {stable_mosaic.version = 11 : i64} {
  func.func @_patch_embed_kernel(%arg0: i32, %arg1: memref<16x192xbf16, #tpu.memory_space<vmem>>, %arg2: memref<192x768xbf16, #tpu.memory_space<vmem>>, %arg3: memref<16x768xf32, #tpu.memory_space<vmem>>, %arg4: memref<16x768xbf16, #tpu.memory_space<vmem>>) attributes {dimension_semantics = [#tpu.dimension_semantics<parallel>], iteration_bounds = array<i64: 2>, scalar_prefetch = 0 : i64, scratch_operands = 0 : i64, tpu.core_type = #tpu.core_type<tc>, window_params = [{transform_indices = @transform_0, window_bounds = array<i64: 16, 192>}, {pipeline_mode = #tpu.pipeline_mode<synchronous>, transform_indices = @transform_1, window_bounds = array<i64: 192, 768>}, {pipeline_mode = #tpu.pipeline_mode<synchronous>, transform_indices = @transform_2, window_bounds = array<i64: 16, 768>}, {transform_indices = @transform_3, window_bounds = array<i64: 16, 768>}]} {
    %c0 = arith.constant 0 : index
    %c0_0 = arith.constant 0 : index
    %0 = vector.load %arg1[%c0, %c0_0] : memref<16x192xbf16, #tpu.memory_space<vmem>>, vector<16x192xbf16>
    %c0_1 = arith.constant 0 : index
    %c0_2 = arith.constant 0 : index
    %1 = vector.load %arg2[%c0_1, %c0_2] : memref<192x768xbf16, #tpu.memory_space<vmem>>, vector<192x768xbf16>
    %cst = arith.constant dense<0.000000e+00> : vector<16x768xf32>
    %2 = tpu.matmul %0, %1, %cst {dimension_numbers = #tpu.dot_dimension_numbers<[1], [0], [0], [1], [0, 0, 1, 1], [], []>} : vector<16x192xbf16>, vector<192x768xbf16>, vector<16x768xf32> -> vector<16x768xf32>
    %c0_3 = arith.constant 0 : index
    %c0_4 = arith.constant 0 : index
    %3 = vector.load %arg3[%c0_3, %c0_4] : memref<16x768xf32, #tpu.memory_space<vmem>>, vector<16x768xf32>
    %4 = arith.addf %2, %3 : vector<16x768xf32>
    %5 = arith.truncf %4 : vector<16x768xf32> to vector<16x768xbf16>
    %c0_5 = arith.constant 0 : index
    %c0_6 = arith.constant 0 : index
    %6 = vector.load %arg4[%c0_5, %c0_6] : memref<16x768xbf16, #tpu.memory_space<vmem>>, vector<16x768xbf16>
    tpu.vector_store %arg4[%c0_5, %c0_6], %5 {strides = array<i32>} : memref<16x768xbf16, #tpu.memory_space<vmem>>, vector<16x768xbf16>,
    return
  }
  func.func @transform_0(%arg0: i32) -> (i32, i32) {
    %c0_i32 = arith.constant 0 : i32
    %c0_i32_0 = arith.constant 0 : i32
    return %arg0, %c0_i32 : i32, i32
  }
  func.func @transform_1(%arg0: i32) -> (i32, i32) {
    %c0_i32 = arith.constant 0 : i32
    %c0_i32_0 = arith.constant 0 : i32
    %c0_i32_1 = arith.constant 0 : i32
    return %c0_i32, %c0_i32_0 : i32, i32
  }
  func.func @transform_2(%arg0: i32) -> (i32, i32) {
    %c0_i32 = arith.constant 0 : i32
    %c0_i32_0 = arith.constant 0 : i32
    %c0_i32_1 = arith.constant 0 : i32
    return %c0_i32, %c0_i32_0 : i32, i32
  }
  func.func @transform_3(%arg0: i32) -> (i32, i32) {
    %c0_i32 = arith.constant 0 : i32
    %c0_i32_0 = arith.constant 0 : i32
    return %arg0, %c0_i32 : i32, i32
  }
}

</mosaic_0001>

<llo_original>
// kernel: embeddings_forward.1
$region0: #{embeddings_forward.1}
  #allocation0 [shape = 'u32[]', space=smem, size = 0x4, offset = 0x4, fixed_abs, tag = 'smem constant byte address 0x4 - core index']
  #allocation1 [shape = 'u32[144,128]{1,0:T(1,128)}', space=vmem, size = 0x12000, scoped, tag = 'internal scratch']
  %s0 = inlined_call_operand.vmem [shape: bf16[32,192], index: 0, kind: input, shape index: {}]
  %s1 = inlined_call_operand.vmem [shape: bf16[192,768], index: 1, kind: input, shape index: {}]
  %s2 = inlined_call_operand.vmem [shape: f32[16,768], index: 2, kind: input, shape index: {}]
  %s3 = inlined_call_operand.vmem [shape: bf16[32,768], index: 3, kind: output, shape index: {}]
  %s4 = sld [smem:[#allocation0]]
  $region45: #{embeddings_forward.1} parent=0
    _
  %s6 = ssub.s32 1, %s4
  %s7 = scalar_select 0, %s6, %s4
  loop: start=0, step=1, limit=4
  $region2: #{embeddings_forward.1} parent=0 // loop_pre_header
    _
  $region3: #{embeddings_forward.1} parent=0 // loop_header
    %s9 = sphi 0, %s13
    %p10 = scmp.ge.s32.totalorder %s9, 4
    %s19 = sphi 0, %s21
    %s22 = sphi 0, %s19
    %s23 = sphi 0, %s22
    %s39 = sphi 0, %s23
    %s43 = sphi 0, %s43
    %s45 = sphi 0, %s43
    %s46 = sphi 0, %s45
    %s60 = sphi 0, %s46
    %s64 = sphi 0, %s64
    %s66 = sphi 0, %s64
    %s67 = sphi 0, %s66
    %s81 = sphi 0, %s67
    %s87 = sphi 0, %s89
    %s90 = sphi 0, %s87
    %s91 = sphi 0, %s90
    %s107 = sphi 0, %s91
  $region4: #{embeddings_forward.1} parent=0 // loop_header_branch
    %12 = sbr.rel (%p10) target = $region8
  $region5: #{embeddings_forward.1} parent=0 // loop_body
    %s14 = ssub.s32 %s9, 1
    %s15 = ssub.s32 %s9, 2
    %s16 = sadd.s32 %s9, 1
    %s17 = ssub.s32 %s9, %s16
    %p18 = scmp.eq.s32.totalorder %s17, 0
    %s20 = sadd.s32 %s19, 1
    %s21 = scalar_select %p18, %s19, %s20
    %p24 = pneg %p18
    %p25 = scmp.eq.s32.totalorder %s9, 1
    %p26 = por %p24, %p25
    %p27 = scmp.ne.s32.totalorder %s19, %s22
    %p28 = scmp.eq.s32.totalorder %s9, 0
    %p29 = por %p27, %p28
    %p30 = scmp.ne.s32.totalorder %s19, %s22
    %p31 = scmp.eq.s32.totalorder %s14, 1
    %p32 = por %p30, %p31
    %p33 = scmp.ne.s32.totalorder %s22, %s23
    %p34 = scmp.eq.s32.totalorder %s14, 0
    %p35 = por %p33, %p34
    %p36 = scmp.ne.s32.totalorder %s22, %s23
    %p37 = scmp.eq.s32.totalorder %s15, 1
    %p38 = por %p36, %p37
    %p40 = scmp.ne.s32.totalorder %s23, %s39
    %p41 = scmp.eq.s32.totalorder %s15, 0
    %p42 = por %p40, %p41
    %s44 = sadd.s32 %s43, 1
    %p47 = scmp.eq.s32.totalorder %s9, 1
    %p48 = scmp.ne.s32.totalorder %s43, %s45
    %p49 = scmp.eq.s32.totalorder %s9, 0
    %p50 = por %p48, %p49
    %p51 = scmp.ne.s32.totalorder %s43, %s45
    %p52 = scmp.eq.s32.totalorder %s14, 1
    %p53 = por %p51, %p52
    %p54 = scmp.ne.s32.totalorder %s45, %s46
    %p55 = scmp.eq.s32.totalorder %s14, 0
    %p56 = por %p54, %p55
    %p57 = scmp.ne.s32.totalorder %s45, %s46
    %p58 = scmp.eq.s32.totalorder %s15, 1
    %p59 = por %p57, %p58
    %p61 = scmp.ne.s32.totalorder %s46, %s60
    %p62 = scmp.eq.s32.totalorder %s15, 0
    %p63 = por %p61, %p62
    %s65 = sadd.s32 %s64, 1
    %p68 = scmp.eq.s32.totalorder %s9, 1
    %p69 = scmp.ne.s32.totalorder %s64, %s66
    %p70 = scmp.eq.s32.totalorder %s9, 0
    %p71 = por %p69, %p70
    %p72 = scmp.ne.s32.totalorder %s64, %s66
    %p73 = scmp.eq.s32.totalorder %s14, 1
    %p74 = por %p72, %p73
    %p75 = scmp.ne.s32.totalorder %s66, %s67
    %p76 = scmp.eq.s32.totalorder %s14, 0
    %p77 = por %p75, %p76
    %p78 = scmp.ne.s32.totalorder %s66, %s67
    %p79 = scmp.eq.s32.totalorder %s15, 1
    %p80 = por %p78, %p79
    %p82 = scmp.ne.s32.totalorder %s67, %s81
    %p83 = scmp.eq.s32.totalorder %s15, 0
    %p84 = por %p82, %p83
    %s85 = ssub.s32 %s9, %s16
    %p86 = scmp.eq.s32.totalorder %s85, 0
    %s88 = sadd.s32 %s87, 1
    %s89 = scalar_select %p86, %s87, %s88
    %p92 = pneg %p86
    %p93 = scmp.eq.s32.totalorder %s9, 1
    %p94 = por %p92, %p93
    %p95 = scmp.ne.s32.totalorder %s87, %s90
    %p96 = scmp.eq.s32.totalorder %s9, 0
    %p97 = por %p95, %p96
    %p98 = scmp.ne.s32.totalorder %s87, %s90
    %p99 = scmp.eq.s32.totalorder %s14, 1
    %p100 = por %p98, %p99
    %p101 = scmp.ne.s32.totalorder %s90, %s91
    %p102 = scmp.eq.s32.totalorder %s14, 0
    %p103 = por %p101, %p102
    %p104 = scmp.ne.s32.totalorder %s90, %s91
    %p105 = scmp.eq.s32.totalorder %s15, 1
    %p106 = por %p104, %p105
    %p108 = scmp.ne.s32.totalorder %s91, %s107
    %p109 = scmp.eq.s32.totalorder %s15, 0
    %p110 = por %p108, %p109
    %p111 = scmp.le.s32.totalorder 1, %s9
    %p112 = scmp.lt.s32.totalorder %s9, 3
    %p113 = pnand %p111, %p112
    %p114 = pneg %p113
    // Predicated region
    $region9: #{embeddings_forward.1} parent=5 // pred_check
      _
    $region10: #{embeddings_forward.1} parent=5 // pred_check_branch
      %116 = sbr.rel (%p113) target = $region12
    $region11: #{embeddings_forward.1} parent=5 // pred_region
      %s117 = ssub.s32 %s9, 1
      // Predicated region
      $region13: #{embeddings_forward.1} parent=11 // pred_check
        %p118 = pneg %p56
      $region14: #{embeddings_forward.1} parent=11 // pred_check_branch
        %120 = sbr.rel (%p118) target = $region16
      $region15: #{embeddings_forward.1} parent=11 // pred_region
        _
      $region16: #{embeddings_forward.1} parent=11 // pred_fallthru
        _
      // Predicated region
      $region17: #{embeddings_forward.1} parent=11 // pred_check
        %p121 = pneg %p77
      $region18: #{embeddings_forward.1} parent=11 // pred_check_branch
        %123 = sbr.rel (%p121) target = $region20
      $region19: #{embeddings_forward.1} parent=11 // pred_region
        _
      $region20: #{embeddings_forward.1} parent=11 // pred_fallthru
        _
    $region12: #{embeddings_forward.1} parent=5 // pred_fallthru
      _
    %p124 = scmp.lt.s32.totalorder %s9, 2
    // Predicated region
    $region21: #{embeddings_forward.1} parent=5 // pred_check
      %p125 = pneg %p124
    $region22: #{embeddings_forward.1} parent=5 // pred_check_branch
      %127 = sbr.rel (%p125) target = $region24
    $region23: #{embeddings_forward.1} parent=5 // pred_region
      // Predicated region
      $region25: #{embeddings_forward.1} parent=23 // pred_check
        %p128 = pneg %p29
      $region26: #{embeddings_forward.1} parent=23 // pred_check_branch
        %130 = sbr.rel (%p128) target = $region28
      $region27: #{embeddings_forward.1} parent=23 // pred_region
        %s131 = smul.u32 2, %s9
        %p132 = scmp.lt.s32.totalorder %s131, 3
        %s133 = scalar_select %p132, %s131, 3
        %s134 = smul.addr %s133, 2
        %s135 = smul.addr %s134, 4
        %s136 = scalar_lea.vmem %s0, %s135
        %s137 = smul.u32 2, %s9
      $region28: #{embeddings_forward.1} parent=23 // pred_fallthru
        _
    $region24: #{embeddings_forward.1} parent=5 // pred_fallthru
      _
    %p138 = scmp.le.s32.totalorder 1, %s9
    %p139 = scmp.lt.s32.totalorder %s9, 3
    %p140 = pnand %p138, %p139
    %p141 = pneg %p140
    // Predicated region
    $region29: #{embeddings_forward.1} parent=5 // pred_check
      _
    $region30: #{embeddings_forward.1} parent=5 // pred_check_branch
      %143 = sbr.rel (%p140) target = $region32
    $region31: #{embeddings_forward.1} parent=5 // pred_region
      %s144 = ssub.s32 %s9, 1
      %s145 = smul.u32 2, %s14
      %p146 = scmp.lt.s32.totalorder %s145, 3
      %s147 = scalar_select %p146, %s145, 3
      %s148 = smul.addr %s147, 2
      %s149 = smul.addr %s148, 4
      %s150 = scalar_lea.vmem %s0, %s149
      %p151 = pneg %p35
      %p152 = pneg %p32
      %p153 = pneg %p56
      %p154 = pneg %p53
      %p155 = pneg %p77
      %p156 = pneg %p74
      %p157 = pneg %p103
      %p158 = pneg %p100
      %s159 = smul.u32 2, %s14
      %p160 = scmp.lt.s32.totalorder %s159, 3
      %s161 = scalar_select %p160, %s159, 3
      %s162 = smul.addr %s161, 6
      %s163 = smul.addr %s162, 4
      %s164 = scalar_lea.vmem %s3, %s163
      %s165 = smul.u32 2, %s14
      %p166 = scmp.lt.s32.totalorder %s165, 3
      %s167 = scalar_select %p166, %s165, 3
      %s168 = smul.addr %s167, 2
      %s169 = smul.addr %s168, 4
      %s170 = scalar_lea.vmem %s0, %s169
      %s171 = smul.u32 2, %s14
      %s172 = smul.u32 2, %s14
      %p173 = scmp.lt.s32.totalorder %s172, 3
      %s174 = scalar_select %p173, %s172, 3
      %s175 = smul.addr %s174, 6
      %s176 = smul.addr %s175, 4
      %s177 = scalar_lea.vmem %s3, %s176
      %s178 = smul.u32 2, %s14
      %v180 = vld [vmem:[%s170] sm:$0xff]
      %v181 = vld [vmem:[%s170 + $0x8] sm:$0xff]
      %v182 = vld [vmem:[%s1] sm:$0xff]
      %v183 = vld [vmem:[%s1 + $0x8] sm:$0xff]
      %v184 = vld [vmem:[%s1 + $0x10] sm:$0xff]
      %v185 = vld [vmem:[%s1 + $0x18] sm:$0xff]
      %v186 = vld [vmem:[%s1 + $0x20] sm:$0xff]
      %v187 = vld [vmem:[%s1 + $0x28] sm:$0xff]
      %v188 = vld [vmem:[%s1 + $0x30] sm:$0xff]
      %v189 = vld [vmem:[%s1 + $0x38] sm:$0xff]
      %v190 = vld [vmem:[%s1 + $0x40] sm:$0xff]
      %v191 = vld [vmem:[%s1 + $0x48] sm:$0xff]
      %v192 = vld [vmem:[%s1 + $0x50] sm:$0xff]
      %v193 = vld [vmem:[%s1 + $0x58] sm:$0xff]
      %v194 = vld [vmem:[%s1 + $0x60] sm:$0xff]
      %v195 = vld [vmem:[%s1 + $0x68] sm:$0xff]
      %v196 = vld [vmem:[%s1 + $0x70] sm:$0xff]
      %v197 = vld [vmem:[%s1 + $0x78] sm:$0xff]
      %v198 = vld [vmem:[%s1 + $0x80] sm:$0xff]
      %v199 = vld [vmem:[%s1 + $0x88] sm:$0xff]
      %v200 = vld [vmem:[%s1 + $0x90] sm:$0xff]
      %v201 = vld [vmem:[%s1 + $0x98] sm:$0xff]
      %v202 = vld [vmem:[%s1 + $0xa0] sm:$0xff]
      %v203 = vld [vmem:[%s1 + $0xa8] sm:$0xff]
      %v204 = vld [vmem:[%s1 + $0xb0] sm:$0xff]
      %v205 = vld [vmem:[%s1 + $0xb8] sm:$0xff]
      %v206 = vld [vmem:[%s1 + $0xc0] sm:$0xff]
      %v207 = vld [vmem:[%s1 + $0xc8] sm:$0xff]
      %v208 = vld [vmem:[%s1 + $0xd0] sm:$0xff]
      %v209 = vld [vmem:[%s1 + $0xd8] sm:$0xff]
      %v210 = vld [vmem:[%s1 + $0xe0] sm:$0xff]
      %v211 = vld [vmem:[%s1 + $0xe8] sm:$0xff]
      %v212 = vld [vmem:[%s1 + $0xf0] sm:$0xff]
      %v213 = vld [vmem:[%s1 + $0xf8] sm:$0xff]
      %v214 = vld [vmem:[%s1 + $0x100] sm:$0xff]
      %v215 = vld [vmem:[%s1 + $0x108] sm:$0xff]
      %v216 = vld [vmem:[%s1 + $0x110] sm:$0xff]
      %v217 = vld [vmem:[%s1 + $0x118] sm:$0xff]
      %v218 = vld [vmem:[%s1 + $0x120] sm:$0xff]
      %v219 = vld [vmem:[%s1 + $0x128] sm:$0xff]
      %v220 = vld [vmem:[%s1 + $0x130] sm:$0xff]
      %v221 = vld [vmem:[%s1 + $0x138] sm:$0xff]
      %v222 = vld [vmem:[%s1 + $0x140] sm:$0xff]
      %v223 = vld [vmem:[%s1 + $0x148] sm:$0xff]
      %v224 = vld [vmem:[%s1 + $0x150] sm:$0xff]
      %v225 = vld [vmem:[%s1 + $0x158] sm:$0xff]
      %v226 = vld [vmem:[%s1 + $0x160] sm:$0xff]
      %v227 = vld [vmem:[%s1 + $0x168] sm:$0xff]
      %v228 = vld [vmem:[%s1 + $0x170] sm:$0xff]
      %v229 = vld [vmem:[%s1 + $0x178] sm:$0xff]
      %v230 = vld [vmem:[%s1 + $0x180] sm:$0xff]
      %v231 = vld [vmem:[%s1 + $0x188] sm:$0xff]
      %v232 = vld [vmem:[%s1 + $0x190] sm:$0xff]
      %v233 = vld [vmem:[%s1 + $0x198] sm:$0xff]
      %v234 = vld [vmem:[%s1 + $0x1a0] sm:$0xff]
      %v235 = vld [vmem:[%s1 + $0x1a8] sm:$0xff]
      %v236 = vld [vmem:[%s1 + $0x1b0] sm:$0xff]
      %v237 = vld [vmem:[%s1 + $0x1b8] sm:$0xff]
      %v238 = vld [vmem:[%s1 + $0x1c0] sm:$0xff]
      %v239 = vld [vmem:[%s1 + $0x1c8] sm:$0xff]
      %v240 = vld [vmem:[%s1 + $0x1d0] sm:$0xff]
      %v241 = vld [vmem:[%s1 + $0x1d8] sm:$0xff]
      %v242 = vld [vmem:[%s1 + $0x1e0] sm:$0xff]
      %v243 = vld [vmem:[%s1 + $0x1e8] sm:$0xff]
      %v244 = vld [vmem:[%s1 + $0x1f0] sm:$0xff]
      %v245 = vld [vmem:[%s1 + $0x1f8] sm:$0xff]
      %v246 = vld [vmem:[%s1 + $0x200] sm:$0xff]
      %v247 = vld [vmem:[%s1 + $0x208] sm:$0xff]
      %v248 = vld [vmem:[%s1 + $0x210] sm:$0xff]
      %v249 = vld [vmem:[%s1 + $0x218] sm:$0xff]
      %v250 = vld [vmem:[%s1 + $0x220] sm:$0xff]
      %v251 = vld [vmem:[%s1 + $0x228] sm:$0xff]
      %v252 = vld [vmem:[%s1 + $0x230] sm:$0xff]
      %v253 = vld [vmem:[%s1 + $0x238] sm:$0xff]
      %v254 = vld [vmem:[%s2] sm:$0xff]
      %v255 = vld [vmem:[%s2 + $0x8] sm:$0xff]
      %v256 = vld [vmem:[%s2 + $0x10] sm:$0xff]
      %v257 = vld [vmem:[%s2 + $0x18] sm:$0xff]
      %v258 = vld [vmem:[%s2 + $0x20] sm:$0xff]
      %v259 = vld [vmem:[%s2 + $0x28] sm:$0xff]
      %v260 = vld [vmem:[%s2 + $0x30] sm:$0xff]
      %v261 = vld [vmem:[%s2 + $0x38] sm:$0xff]
      %v262 = vld [vmem:[%s2 + $0x40] sm:$0xff]
      %v263 = vld [vmem:[%s2 + $0x48] sm:$0xff]
      %v264 = vld [vmem:[%s2 + $0x50] sm:$0xff]
      %v265 = vld [vmem:[%s2 + $0x58] sm:$0xff]
      %v268 = vunpack.c.l.b16 %v180
      %v269 = vunpack.c.h.b16 %v180
      %v270 = vunpack.c.l.b16 %v181
      %v271 = vunpack.c.h.b16 %v181
      %v272 = vpack.c.b16 %v270, %v268
      %v273 = vpack.c.b16 %v271, %v269
      %v347 = vunpack.c.l.b16 %v182
      %v348 = vunpack.c.h.b16 %v182
      %v349 = vunpack.c.l.b16 %v183
      %v350 = vunpack.c.h.b16 %v183
      %v351 = vunpack.c.l.b16 %v184
      %v352 = vunpack.c.h.b16 %v184
      %v353 = vunpack.c.l.b16 %v185
      %v354 = vunpack.c.h.b16 %v185
      %v355 = vunpack.c.l.b16 %v186
      %v356 = vunpack.c.h.b16 %v186
      %v357 = vunpack.c.l.b16 %v187
      %v358 = vunpack.c.h.b16 %v187
      %v359 = vunpack.c.l.b16 %v188
      %v360 = vunpack.c.h.b16 %v188
      %v361 = vunpack.c.l.b16 %v189
      %v362 = vunpack.c.h.b16 %v189
      %v363 = vunpack.c.l.b16 %v190
      %v364 = vunpack.c.h.b16 %v190
      %v365 = vunpack.c.l.b16 %v191
      %v366 = vunpack.c.h.b16 %v191
      %v367 = vunpack.c.l.b16 %v192
      %v368 = vunpack.c.h.b16 %v192
      %v369 = vunpack.c.l.b16 %v193
      %v370 = vunpack.c.h.b16 %v193
      %v371 = vunpack.c.l.b16 %v194
      %v372 = vunpack.c.h.b16 %v194
      %v373 = vunpack.c.l.b16 %v195
      %v374 = vunpack.c.h.b16 %v195
      %v375 = vunpack.c.l.b16 %v196
      %v376 = vunpack.c.h.b16 %v196
      %v377 = vunpack.c.l.b16 %v197
      %v378 = vunpack.c.h.b16 %v197
      %v379 = vunpack.c.l.b16 %v198
      %v380 = vunpack.c.h.b16 %v198
      %v381 = vunpack.c.l.b16 %v199
      %v382 = vunpack.c.h.b16 %v199
      %v383 = vunpack.c.l.b16 %v200
      %v384 = vunpack.c.h.b16 %v200
      %v385 = vunpack.c.l.b16 %v201
      %v386 = vunpack.c.h.b16 %v201
      %v387 = vunpack.c.l.b16 %v202
      %v388 = vunpack.c.h.b16 %v202
      %v389 = vunpack.c.l.b16 %v203
      %v390 = vunpack.c.h.b16 %v203
      %v391 = vunpack.c.l.b16 %v204
      %v392 = vunpack.c.h.b16 %v204
      %v393 = vunpack.c.l.b16 %v205
      %v394 = vunpack.c.h.b16 %v205
      %v395 = vunpack.c.l.b16 %v206
      %v396 = vunpack.c.h.b16 %v206
      %v397 = vunpack.c.l.b16 %v207
      %v398 = vunpack.c.h.b16 %v207
      %v399 = vunpack.c.l.b16 %v208
      %v400 = vunpack.c.h.b16 %v208
      %v401 = vunpack.c.l.b16 %v209
      %v402 = vunpack.c.h.b16 %v209
      %v403 = vunpack.c.l.b16 %v210
      %v404 = vunpack.c.h.b16 %v210
      %v405 = vunpack.c.l.b16 %v211
      %v406 = vunpack.c.h.b16 %v211
      %v407 = vunpack.c.l.b16 %v212
      %v408 = vunpack.c.h.b16 %v212
      %v409 = vunpack.c.l.b16 %v213
      %v410 = vunpack.c.h.b16 %v213
      %v411 = vunpack.c.l.b16 %v214
      %v412 = vunpack.c.h.b16 %v214
      %v413 = vunpack.c.l.b16 %v215
      %v414 = vunpack.c.h.b16 %v215
      %v415 = vunpack.c.l.b16 %v216
      %v416 = vunpack.c.h.b16 %v216
      %v417 = vunpack.c.l.b16 %v217
      %v418 = vunpack.c.h.b16 %v217
      %v419 = vunpack.c.l.b16 %v218
      %v420 = vunpack.c.h.b16 %v218
      %v421 = vunpack.c.l.b16 %v219
      %v422 = vunpack.c.h.b16 %v219
      %v423 = vunpack.c.l.b16 %v220
      %v424 = vunpack.c.h.b16 %v220
      %v425 = vunpack.c.l.b16 %v221
      %v426 = vunpack.c.h.b16 %v221
      %v427 = vunpack.c.l.b16 %v222
      %v428 = vunpack.c.h.b16 %v222
      %v429 = vunpack.c.l.b16 %v223
      %v430 = vunpack.c.h.b16 %v223
      %v431 = vunpack.c.l.b16 %v224
      %v432 = vunpack.c.h.b16 %v224
      %v433 = vunpack.c.l.b16 %v225
      %v434 = vunpack.c.h.b16 %v225
      %v435 = vunpack.c.l.b16 %v226
      %v436 = vunpack.c.h.b16 %v226
      %v437 = vunpack.c.l.b16 %v227
      %v438 = vunpack.c.h.b16 %v227
      %v439 = vunpack.c.l.b16 %v228
      %v440 = vunpack.c.h.b16 %v228
      %v441 = vunpack.c.l.b16 %v229
      %v442 = vunpack.c.h.b16 %v229
      %v443 = vunpack.c.l.b16 %v230
      %v444 = vunpack.c.h.b16 %v230
      %v445 = vunpack.c.l.b16 %v231
      %v446 = vunpack.c.h.b16 %v231
      %v447 = vunpack.c.l.b16 %v232
      %v448 = vunpack.c.h.b16 %v232
      %v449 = vunpack.c.l.b16 %v233
      %v450 = vunpack.c.h.b16 %v233
      %v451 = vunpack.c.l.b16 %v234
      %v452 = vunpack.c.h.b16 %v234
      %v453 = vunpack.c.l.b16 %v235
      %v454 = vunpack.c.h.b16 %v235
      %v455 = vunpack.c.l.b16 %v236
      %v456 = vunpack.c.h.b16 %v236
      %v457 = vunpack.c.l.b16 %v237
      %v458 = vunpack.c.h.b16 %v237
      %v459 = vunpack.c.l.b16 %v238
      %v460 = vunpack.c.h.b16 %v238
      %v461 = vunpack.c.l.b16 %v239
      %v462 = vunpack.c.h.b16 %v239
      %v463 = vunpack.c.l.b16 %v240
      %v464 = vunpack.c.h.b16 %v240
      %v465 = vunpack.c.l.b16 %v241
      %v466 = vunpack.c.h.b16 %v241
      %v467 = vunpack.c.l.b16 %v242
      %v468 = vunpack.c.h.b16 %v242
      %v469 = vunpack.c.l.b16 %v243
      %v470 = vunpack.c.h.b16 %v243
      %v471 = vunpack.c.l.b16 %v244
      %v472 = vunpack.c.h.b16 %v244
      %v473 = vunpack.c.l.b16 %v245
      %v474 = vunpack.c.h.b16 %v245
      %v475 = vunpack.c.l.b16 %v246
      %v476 = vunpack.c.h.b16 %v246
      %v477 = vunpack.c.l.b16 %v247
      %v478 = vunpack.c.h.b16 %v247
      %v479 = vunpack.c.l.b16 %v248
      %v480 = vunpack.c.h.b16 %v248
      %v481 = vunpack.c.l.b16 %v249
      %v482 = vunpack.c.h.b16 %v249
      %v483 = vunpack.c.l.b16 %v250
      %v484 = vunpack.c.h.b16 %v250
      %v485 = vunpack.c.l.b16 %v251
      %v486 = vunpack.c.h.b16 %v251
      %v487 = vunpack.c.l.b16 %v252
      %v488 = vunpack.c.h.b16 %v252
      %v489 = vunpack.c.l.b16 %v253
      %v490 = vunpack.c.h.b16 %v253
      %v491 = vpack.c.b16 %v353, %v347
      %v492 = vpack.c.b16 %v354, %v348
      %v493 = vpack.c.b16 %v355, %v349
      %v494 = vpack.c.b16 %v356, %v350
      %v495 = vpack.c.b16 %v357, %v351
      %v496 = vpack.c.b16 %v358, %v352
      %v497 = vpack.c.b16 %v365, %v359
      %v498 = vpack.c.b16 %v366, %v360
      %v499 = vpack.c.b16 %v367, %v361
      %v500 = vpack.c.b16 %v368, %v362
      %v501 = vpack.c.b16 %v369, %v363
      %v502 = vpack.c.b16 %v370, %v364
      %v503 = vpack.c.b16 %v377, %v371
      %v504 = vpack.c.b16 %v378, %v372
      %v505 = vpack.c.b16 %v379, %v373
      %v506 = vpack.c.b16 %v380, %v374
      %v507 = vpack.c.b16 %v381, %v375
      %v508 = vpack.c.b16 %v382, %v376
      %v509 = vpack.c.b16 %v389, %v383
      %v510 = vpack.c.b16 %v390, %v384
      %v511 = vpack.c.b16 %v391, %v385
      %v512 = vpack.c.b16 %v392, %v386
      %v513 = vpack.c.b16 %v393, %v387
      %v514 = vpack.c.b16 %v394, %v388
      %v515 = vpack.c.b16 %v401, %v395
      %v516 = vpack.c.b16 %v402, %v396
      %v517 = vpack.c.b16 %v403, %v397
      %v518 = vpack.c.b16 %v404, %v398
      %v519 = vpack.c.b16 %v405, %v399
      %v520 = vpack.c.b16 %v406, %v400
      %v521 = vpack.c.b16 %v413, %v407
      %v522 = vpack.c.b16 %v414, %v408
      %v523 = vpack.c.b16 %v415, %v409
      %v524 = vpack.c.b16 %v416, %v410
      %v525 = vpack.c.b16 %v417, %v411
      %v526 = vpack.c.b16 %v418, %v412
      %v527 = vpack.c.b16 %v425, %v419
      %v528 = vpack.c.b16 %v426, %v420
      %v529 = vpack.c.b16 %v427, %v421
      %v530 = vpack.c.b16 %v428, %v422
      %v531 = vpack.c.b16 %v429, %v423
      %v532 = vpack.c.b16 %v430, %v424
      %v533 = vpack.c.b16 %v437, %v431
      %v534 = vpack.c.b16 %v438, %v432
      %v535 = vpack.c.b16 %v439, %v433
      %v536 = vpack.c.b16 %v440, %v434
      %v537 = vpack.c.b16 %v441, %v435
      %v538 = vpack.c.b16 %v442, %v436
      %v539 = vpack.c.b16 %v449, %v443
      %v540 = vpack.c.b16 %v450, %v444
      %v541 = vpack.c.b16 %v451, %v445
      %v542 = vpack.c.b16 %v452, %v446
      %v543 = vpack.c.b16 %v453, %v447
      %v544 = vpack.c.b16 %v454, %v448
      %v545 = vpack.c.b16 %v461, %v455
      %v546 = vpack.c.b16 %v462, %v456
      %v547 = vpack.c.b16 %v463, %v457
      %v548 = vpack.c.b16 %v464, %v458
      %v549 = vpack.c.b16 %v465, %v459
      %v550 = vpack.c.b16 %v466, %v460
      %v551 = vpack.c.b16 %v473, %v467
      %v552 = vpack.c.b16 %v474, %v468
      %v553 = vpack.c.b16 %v475, %v469
      %v554 = vpack.c.b16 %v476, %v470
      %v555 = vpack.c.b16 %v477, %v471
      %v556 = vpack.c.b16 %v478, %v472
      %v557 = vpack.c.b16 %v485, %v479
      %v558 = vpack.c.b16 %v486, %v480
      %v559 = vpack.c.b16 %v487, %v481
      %v560 = vpack.c.b16 %v488, %v482
      %v561 = vpack.c.b16 %v489, %v483
      %v562 = vpack.c.b16 %v490, %v484
      %vm635 = vcmask 523264
      %v637 = vsel %vm635, %v273, 0
      %639 = vmatprep.subr.bf16.mxu0 %v534
      %640 = vmatpush1.bf16.msra.mxu0 %v533
      %641 = vmatprep.subr.bf16.mxu0 %v528
      %642 = vmatpush1.bf16.msra.mxu0 %v527
      %643 = vmatprep.subr.bf16.mxu0 %v522
      %644 = vmatpush1.bf16.msra.mxu0 %v521
      %645 = vmatprep.subr.bf16.mxu0 %v516
      %646 = vmatpush1.bf16.msra.mxu0 %v515
      %647 = vmatprep.subr.bf16.mxu0 %v510
      %648 = vmatpush1.bf16.msra.mxu0 %v509
      %649 = vmatprep.subr.bf16.mxu0 %v504
      %650 = vmatpush1.bf16.msra.mxu0 %v503
      %651 = vmatprep.subr.bf16.mxu0 %v498
      %652 = vmatpush1.bf16.msra.mxu0 %v497
      %653 = vmatprep.subr.bf16.mxu0 %v492
      %654 = vmatpush1.bf16.msra.mxu0 %v491
      %655 = vmatprep.subr.bf16.mxu0 0
      %656 = vmatpush2.bf16.msra.mxu0 0
      %657 = vmatprep.subr.bf16.mxu0 0
      %658 = vmatpush2.bf16.msra.mxu0 0
      %659 = vmatprep.subr.bf16.mxu0 0
      %660 = vmatpush2.bf16.msra.mxu0 0
      %661 = vmatprep.subr.bf16.mxu0 0
      %662 = vmatpush2.bf16.msra.mxu0 0
      %663 = vmatprep.subr.bf16.mxu0 %v558
      %664 = vmatpush2.bf16.msra.mxu0 %v557
      %665 = vmatprep.subr.bf16.mxu0 %v552
      %666 = vmatpush2.bf16.msra.mxu0 %v551
      %667 = vmatprep.subr.bf16.mxu0 %v546
      %668 = vmatpush2.bf16.msra.mxu0 %v545
      %669 = vmatprep.subr.bf16.mxu0 %v540
      %670 = vmatpush2.bf16.msra.mxu0 %v539
      %671 = vmatprep.mubr.bf16.mxu0 %v637
      %672 = vmatmul.mubr.bf16.gmra.mxu0 %v272
      %v673 = vpop.f32.mrf.mxu0
      %v674 = vadd.f32 %v254, %v673
      %v675 = vpop.f32.mrf.mxu0
      %v676 = vadd.f32 %v255, %v675
      %v677 = vpop.f32.mrf.mxu0
      %v678 = vadd.f32 %v260, %v677
      %v679 = vpop.f32.mrf.mxu0
      %v680 = vadd.f32 %v261, %v679
      %681 = vdwg.mxu0
      %682 = vmatprep.subr.bf16.mxu0 %v536
      %683 = vmatpush1.bf16.msra.mxu0 %v535
      %684 = vmatprep.subr.bf16.mxu0 %v530
      %685 = vmatpush1.bf16.msra.mxu0 %v529
      %686 = vmatprep.subr.bf16.mxu0 %v524
      %687 = vmatpush1.bf16.msra.mxu0 %v523
      %688 = vmatprep.subr.bf16.mxu0 %v518
      %689 = vmatpush1.bf16.msra.mxu0 %v517
      %690 = vmatprep.subr.bf16.mxu0 %v512
      %691 = vmatpush1.bf16.msra.mxu0 %v511
      %692 = vmatprep.subr.bf16.mxu0 %v506
      %693 = vmatpush1.bf16.msra.mxu0 %v505
      %694 = vmatprep.subr.bf16.mxu0 %v500
      %695 = vmatpush1.bf16.msra.mxu0 %v499
      %696 = vmatprep.subr.bf16.mxu0 %v494
      %697 = vmatpush1.bf16.msra.mxu0 %v493
      %698 = vmatprep.subr.bf16.mxu0 0
      %699 = vmatpush2.bf16.msra.mxu0 0
      %700 = vmatprep.subr.bf16.mxu0 0
      %701 = vmatpush2.bf16.msra.mxu0 0
      %702 = vmatprep.subr.bf16.mxu0 0
      %703 = vmatpush2.bf16.msra.mxu0 0
      %704 = vmatprep.subr.bf16.mxu0 0
      %705 = vmatpush2.bf16.msra.mxu0 0
      %706 = vmatprep.subr.bf16.mxu0 %v560
      %707 = vmatpush2.bf16.msra.mxu0 %v559
      %708 = vmatprep.subr.bf16.mxu0 %v554
      %709 = vmatpush2.bf16.msra.mxu0 %v553
      %710 = vmatprep.subr.bf16.mxu0 %v548
      %711 = vmatpush2.bf16.msra.mxu0 %v547
      %712 = vmatprep.subr.bf16.mxu0 %v542
      %713 = vmatpush2.bf16.msra.mxu0 %v541
      %714 = vmatprep.mubr.bf16.mxu0 %v637
      %715 = vmatmul.mubr.bf16.gmra.mxu0 %v272
      %v716 = vpop.f32.mrf.mxu0
      %v717 = vadd.f32 %v256, %v716
      %v718 = vpop.f32.mrf.mxu0
      %v719 = vadd.f32 %v257, %v718
      %v720 = vpop.f32.mrf.mxu0
      %v721 = vadd.f32 %v262, %v720
      %v722 = vpop.f32.mrf.mxu0
      %v723 = vadd.f32 %v263, %v722
      %724 = vdwg.mxu0
      %725 = vmatprep.subr.bf16.mxu0 %v538
      %726 = vmatpush1.bf16.msra.mxu0 %v537
      %727 = vmatprep.subr.bf16.mxu0 %v532
      %728 = vmatpush1.bf16.msra.mxu0 %v531
      %729 = vmatprep.subr.bf16.mxu0 %v526
      %730 = vmatpush1.bf16.msra.mxu0 %v525
      %731 = vmatprep.subr.bf16.mxu0 %v520
      %732 = vmatpush1.bf16.msra.mxu0 %v519
      %733 = vmatprep.subr.bf16.mxu0 %v514
      %734 = vmatpush1.bf16.msra.mxu0 %v513
      %735 = vmatprep.subr.bf16.mxu0 %v508
      %736 = vmatpush1.bf16.msra.mxu0 %v507
      %737 = vmatprep.subr.bf16.mxu0 %v502
      %738 = vmatpush1.bf16.msra.mxu0 %v501
      %739 = vmatprep.subr.bf16.mxu0 %v496
      %740 = vmatpush1.bf16.msra.mxu0 %v495
      %741 = vmatprep.subr.bf16.mxu0 0
      %742 = vmatpush2.bf16.msra.mxu0 0
      %743 = vmatprep.subr.bf16.mxu0 0
      %744 = vmatpush2.bf16.msra.mxu0 0
      %745 = vmatprep.subr.bf16.mxu0 0
      %746 = vmatpush2.bf16.msra.mxu0 0
      %747 = vmatprep.subr.bf16.mxu0 0
      %748 = vmatpush2.bf16.msra.mxu0 0
      %749 = vmatprep.subr.bf16.mxu0 %v562
      %750 = vmatpush2.bf16.msra.mxu0 %v561
      %751 = vmatprep.subr.bf16.mxu0 %v556
      %752 = vmatpush2.bf16.msra.mxu0 %v555
      %753 = vmatprep.subr.bf16.mxu0 %v550
      %754 = vmatpush2.bf16.msra.mxu0 %v549
      %755 = vmatprep.subr.bf16.mxu0 %v544
      %756 = vmatpush2.bf16.msra.mxu0 %v543
      %757 = vmatprep.mubr.bf16.mxu0 %v637
      %758 = vmatmul.mubr.bf16.gmra.mxu0 %v272
      %v759 = vpop.f32.mrf.mxu0
      %v760 = vadd.f32 %v258, %v759
      %v761 = vpop.f32.mrf.mxu0
      %v762 = vadd.f32 %v259, %v761
      %v763 = vpop.f32.mrf.mxu0
      %v764 = vadd.f32 %v264, %v763
      %v765 = vpop.f32.mrf.mxu0
      %v766 = vadd.f32 %v265, %v765
      %767 = vdwg.mxu0
      %v768 = vpack.c.bf16 %v678, %v674
      %v769 = vpack.c.bf16 %v680, %v676
      %v770 = vpack.c.bf16 %v721, %v717
      %v771 = vpack.c.bf16 %v723, %v719
      %v772 = vpack.c.bf16 %v764, %v760
      %v773 = vpack.c.bf16 %v766, %v762
      %v780 = vunpack.c.l.b16 %v768
      %v781 = vunpack.c.l.b16 %v769
      %v782 = vunpack.c.l.b16 %v770
      %v783 = vunpack.c.l.b16 %v771
      %v784 = vunpack.c.l.b16 %v772
      %v785 = vunpack.c.l.b16 %v773
      %v786 = vunpack.c.h.b16 %v768
      %v787 = vunpack.c.h.b16 %v769
      %v788 = vunpack.c.h.b16 %v770
      %v789 = vunpack.c.h.b16 %v771
      %v790 = vunpack.c.h.b16 %v772
      %v791 = vunpack.c.h.b16 %v773
      %v792 = vpack.c.b16 %v781, %v780
      %v793 = vpack.c.b16 %v783, %v782
      %v794 = vpack.c.b16 %v785, %v784
      %v795 = vpack.c.b16 %v787, %v786
      %v796 = vpack.c.b16 %v789, %v788
      %v797 = vpack.c.b16 %v791, %v790
      %804 = vst [vmem:[%s177] sm:$0xff] %v792
      %805 = vst [vmem:[%s177 + $0x8] sm:$0xff] %v793
      %806 = vst [vmem:[%s177 + $0x10] sm:$0xff] %v794
      %807 = vst [vmem:[%s177 + $0x18] sm:$0xff] %v795
      %808 = vst [vmem:[%s177 + $0x20] sm:$0xff] %v796
      %809 = vst [vmem:[%s177 + $0x28] sm:$0xff] %v797
      %s810 = smul.u32 2, %s14
      %p811 = scmp.lt.s32.totalorder %s810, 3
      %s812 = scalar_select %p811, %s810, 3
      %s813 = smul.addr %s812, 6
      %s814 = smul.addr %s813, 4
      %s815 = scalar_lea.vmem %s3, %s814
      // Predicated region
      $region33: #{embeddings_forward.1} parent=31 // pred_check
        %p816 = pneg %p100
      $region34: #{embeddings_forward.1} parent=31 // pred_check_branch
        %818 = sbr.rel (%p816) target = $region36
      $region35: #{embeddings_forward.1} parent=31 // pred_region
        %s819 = smul.u32 2, %s14
      $region36: #{embeddings_forward.1} parent=31 // pred_fallthru
        _
    $region32: #{embeddings_forward.1} parent=5 // pred_fallthru
      _
    %p820 = scmp.le.s32.totalorder 2, %s9
    // Predicated region
    $region37: #{embeddings_forward.1} parent=5 // pred_check
      %p821 = pneg %p820
    $region38: #{embeddings_forward.1} parent=5 // pred_check_branch
      %823 = sbr.rel (%p821) target = $region40
    $region39: #{embeddings_forward.1} parent=5 // pred_region
      %s824 = ssub.s32 %s9, 2
      // Predicated region
      $region41: #{embeddings_forward.1} parent=39 // pred_check
        %p825 = pneg %p106
      $region42: #{embeddings_forward.1} parent=39 // pred_check_branch
        %827 = sbr.rel (%p825) target = $region44
      $region43: #{embeddings_forward.1} parent=39 // pred_region
        %s828 = smul.u32 2, %s15
        %p829 = scmp.lt.s32.totalorder %s828, 3
        %s830 = scalar_select %p829, %s828, 3
        %s831 = smul.addr %s830, 6
        %s832 = smul.addr %s831, 4
        %s833 = scalar_lea.vmem %s3, %s832
      $region44: #{embeddings_forward.1} parent=39 // pred_fallthru
        _
    $region40: #{embeddings_forward.1} parent=5 // pred_fallthru
      _
  $region6: #{embeddings_forward.1} parent=0 // loop_footer
    %s13 = sadd.s32 1, %s9
  $region7: #{embeddings_forward.1} parent=0 // loop_footer_branch
    %8 = sbr.rel target = $region3
  $region8: #{embeddings_forward.1} parent=0 // loop_exit
    _

</llo_original>
